<compile_context>
chip_gen: v5e
topology: v5e:2x2
jax: 0.10.0
libtpu: 0.0.40
codegen_flags: <defaults>
</compile_context>

<pallas_src>
import jax
import jax.numpy as jnp
from jax.experimental import pallas as pl
from jax.experimental.pallas import tpu as pltpu


def _round_up(n, m):
    return ((n + m - 1) // m) * m


def _pad2d(a, rows, cols):
    r, c = a.shape
    if r == rows and c == cols:
        return a
    return jnp.pad(a, ((0, rows - r), (0, cols - c)))


def _device_kind():
    try:
        return jax.devices()[0].device_kind.lower()
    except Exception:
        return ""


def _default_compute_dtype(x_dtype):
    # bf16 on v6e/v7x: f32 matmuls take multiple MXU passes there and bf16
    # halves the x HBM read (the binding resource). Keep x.dtype on v5e/other.
    kind = _device_kind()
    if "v6" in kind or "v7" in kind:
        return jnp.bfloat16
    return x_dtype


def _vmem_cap_bytes():
    kind = _device_kind()
    if "v7" in kind:
        return 48 << 20     # 64 MiB physical per TC -> leave compiler headroom
    if "v5" in kind or "v6" in kind:
        return 100 << 20    # 128 MiB physical
    return 48 << 20


def _choose_batch_tile(B, sublane, tb_max=512):
    """Pick (tile, n_steps) so n_steps*tile >= B with minimal padding waste."""
    n_steps = -(-B // tb_max)
    # v7x megacore: for large batches make sure the "parallel" axis has at
    # least 2 steps so both TensorCores get work. Tiny mem-bound launches stay
    # as a single step (splitting them is pure overhead).
    if n_steps == 1 and B >= 256:
        n_steps = 2
    tb = _round_up(-(-B // n_steps), sublane)
    return tb, n_steps


def mlp_kernel(x_ref, w1_ref, b1_ref, w2_ref, b2_ref, o_ref):
    # layer1: x @ W1 + b1, ReLU. x is cast to the weight dtype in-vreg (no
    # extra HBM pass); both dots accumulate in f32 on the MXU; bias-add/ReLU
    # stay in f32 on the VPU.
    h = jnp.dot(x_ref[...].astype(w1_ref.dtype), w1_ref[...],
                preferred_element_type=jnp.float32)
    h = jnp.maximum(h + b1_ref[...], 0.0)            # (tb, H_p) + (1, H_p)
    # layer2: h @ W2 + b2; cast h right after the ReLU to shrink live f32 state.
    out = jnp.dot(h.astype(w2_ref.dtype), w2_ref[...],
                  preferred_element_type=jnp.float32)
    # TODO(synk): if a (D_out, B) layout is acceptable downstream, compute
    # out^T = W2^T @ h^T so the store lane dim is the wide batch tile instead
    # of the tiny D_out (unmasked vst). Masked vst on D_out=16 is fine for now.
    o_ref[...] = (out + b2_ref[...]).astype(o_ref.dtype)


def prepare_clcp_params(w1, b1, w2, b2, *, compute_dtype=None,
                        x_dtype=jnp.float32):
    """One-time parameter prep (hoisted out of the per-forward path).

    w1: (D_in, H)   b1: (1, H) or (H,)     (transposed vs PyTorch's (out, in))
    w2: (H, D_out)  b2: (1, D_out) or (D_out,)
    Only H is padded (to a multiple of 128); biases are kept in f32.
    """
    if compute_dtype is None:
        compute_dtype = _default_compute_dtype(jnp.dtype(x_dtype))
    D_in, H = w1.shape
    D_out = w2.shape[1]
    H_p = _round_up(H, 128)
    w1p = _pad2d(w1.astype(compute_dtype), D_in, H_p)
    b1p = _pad2d(jnp.asarray(b1, jnp.float32).reshape(1, H), 1, H_p)
    w2p = _pad2d(w2.astype(compute_dtype), H_p, D_out)
    b2p = jnp.asarray(b2, jnp.float32).reshape(1, D_out)
    return (w1p, b1p, w2p, b2p, H)


def clcp_forward(x, params, *, tb=None, out_dtype=None):
    """Fused (Linear -> ReLU -> Linear) forward. x: (B, D_in) like PyTorch."""
    w1p, b1p, w2p, b2p, H = params
    B, D_in = x.shape
    H_p = w1p.shape[1]
    D_out = w2p.shape[1]
    assert w1p.shape[0] == D_in and w2p.shape[0] == H_p
    if out_dtype is None:
        out_dtype = x.dtype
    compute_dtype = w1p.dtype
    cdt_size = jnp.dtype(compute_dtype).itemsize
    x_size = jnp.dtype(x.dtype).itemsize
    out_size = jnp.dtype(out_dtype).itemsize

    # Batch tile: sublane multiple matching the compute dtype packing.
    sub = 16 if cdt_size <= 2 else 8
    if tb is None:
        tb, n_steps = _choose_batch_tile(B, sub)
    else:
        tb = max(sub, _round_up(tb, sub))
        n_steps = -(-B // tb)
    B_p = tb * n_steps

    # Batch padding only when B doesn't fill the tiles exactly (wasted rows,
    # not wrong results); lane dims D_in / D_out are never padded.
    xp = x if B_p == B else jnp.pad(x, ((0, B_p - B), (0, 0)))

    # VMEM accounting: x/out tiles double-buffered by the pipeline; the
    # resident weights/biases also counted 2x (default buffering).
    vmem_need = (2 * tb * D_in * x_size
                 + 2 * tb * D_out * out_size
                 + 2 * (D_in * H_p + H_p * D_out) * cdt_size
                 + 2 * (H_p + D_out) * 4)
    vmem_limit = int(min(max(2 * vmem_need, 16 << 20), _vmem_cap_bytes()))

    # Advisory cost from TRUE (unpadded) shapes.
    cost = pl.CostEstimate(
        flops=2 * B * (D_in * H + H * D_out),
        transcendentals=0,
        bytes_accessed=(B * D_in * x_size
                        + (D_in * H + H * D_out) * cdt_size
                        + (H + D_out) * 4
                        + B * D_out * out_size),
    )

    out_p = pl.pallas_call(
        mlp_kernel,
        out_shape=jax.ShapeDtypeStruct((B_p, D_out), out_dtype),
        grid_spec=pltpu.PrefetchScalarGridSpec(
            num_scalar_prefetch=0,
            grid=(n_steps,),
            in_specs=[
                pl.BlockSpec((tb, D_in), lambda i: (i, 0)),     # x tile (true D_in)
                pl.BlockSpec((D_in, H_p), lambda i: (0, 0)),    # W1 (resident)
                pl.BlockSpec((1, H_p), lambda i: (0, 0)),       # b1 (f32)
                pl.BlockSpec((H_p, D_out), lambda i: (0, 0)),   # W2 (resident)
                pl.BlockSpec((1, D_out), lambda i: (0, 0)),     # b2 (f32)
            ],
            out_specs=pl.BlockSpec((tb, D_out), lambda i: (i, 0)),  # true D_out
        ),
        compiler_params=pltpu.CompilerParams(
            dimension_semantics=("parallel",),
            vmem_limit_bytes=vmem_limit),
        cost_estimate=cost,
    )(xp, w1p, b1p, w2p, b2p)

    return out_p if B_p == B else out_p[:B]


def init_linear(key, fan_in, fan_out, dtype=jnp.float32):
    """Deterministic PyTorch-style Linear init (Kaiming-uniform W, uniform b)."""
    kw, kb = jax.random.split(key)
    bound_w = (1.0 / fan_in) ** 0.5 * (3.0 ** 0.5)   # kaiming_uniform(a=sqrt(5))
    bound_b = (1.0 / fan_in) ** 0.5
    # stored as (fan_in, fan_out), i.e. transpose of PyTorch's (out, in)
    w = jax.random.uniform(kw, (fan_in, fan_out), dtype, -bound_w, bound_w)
    b = jax.random.uniform(kb, (1, fan_out), dtype, -bound_b, bound_b)
    return w, b


def reference_forward(x, w1, b1, w2, b2):
    h = jnp.maximum(x @ w1 + b1, 0.0)
    return h @ w2 + b2


if __name__ == "__main__":
    # small shapes implied by opt.model_in_dim / model_n_hidden_1 / model_out_dim
    B, D_in, H, D_out = 16, 32, 64, 16

    key = jax.random.PRNGKey(0)
    kx, k1, k2 = jax.random.split(key, 3)
    x = jax.random.normal(kx, (B, D_in), jnp.float32)
    w1, b1 = init_linear(k1, D_in, H)
    w2, b2 = init_linear(k2, H, D_out)

    ref = reference_forward(x, w1, b1, w2, b2)

    # f32 compute path: exact-ish vs the pure-JAX reference.
    params_f32 = prepare_clcp_params(w1, b1, w2, b2, compute_dtype=jnp.float32)
    out = jax.block_until_ready(clcp_forward(x, params_f32))
    assert out.shape == (B, D_out)
    assert jnp.allclose(out, ref, atol=1e-5, rtol=1e-5)

    # Default path: bf16 compute on v6e/v7x (f32 accumulation), f32 elsewhere.
    params_auto = prepare_clcp_params(w1, b1, w2, b2)
    out_auto = jax.block_until_ready(clcp_forward(x, params_auto))
    assert out_auto.shape == (B, D_out)
    assert jnp.allclose(out_auto, ref, atol=1e-1, rtol=1e-1)

    print("KERNEL_OK")
</pallas_src>

<mosaic_0001>
module attributes {stable_mosaic.version = 11 : i64} {
  func.func @mlp_kernel(%arg0: i32, %arg1: memref<16x32xf32, #tpu.memory_space<vmem>>, %arg2: memref<32x128xf32, #tpu.memory_space<vmem>>, %arg3: memref<1x128xf32, #tpu.memory_space<vmem>>, %arg4: memref<128x16xf32, #tpu.memory_space<vmem>>, %arg5: memref<1x16xf32, #tpu.memory_space<vmem>>, %arg6: memref<16x16xf32, #tpu.memory_space<vmem>>) attributes {dimension_semantics = [#tpu.dimension_semantics<parallel>], iteration_bounds = array<i64: 1>, scalar_prefetch = 0 : i64, scratch_operands = 0 : i64, tpu.core_type = #tpu.core_type<tc>, window_params = [{transform_indices = @transform_0, window_bounds = array<i64: 16, 32>}, {pipeline_mode = #tpu.pipeline_mode<synchronous>, transform_indices = @transform_1, window_bounds = array<i64: 32, 128>}, {pipeline_mode = #tpu.pipeline_mode<synchronous>, transform_indices = @transform_2, window_bounds = array<i64: 1, 128>}, {pipeline_mode = #tpu.pipeline_mode<synchronous>, transform_indices = @transform_3, window_bounds = array<i64: 128, 16>}, {pipeline_mode = #tpu.pipeline_mode<synchronous>, transform_indices = @transform_4, window_bounds = array<i64: 1, 16>}, {transform_indices = @transform_5, window_bounds = array<i64: 16, 16>}]} {
    %c0 = arith.constant 0 : index
    %c0_0 = arith.constant 0 : index
    %0 = vector.load %arg1[%c0, %c0_0] : memref<16x32xf32, #tpu.memory_space<vmem>>, vector<16x32xf32>
    %c0_1 = arith.constant 0 : index
    %c0_2 = arith.constant 0 : index
    %1 = vector.load %arg2[%c0_1, %c0_2] : memref<32x128xf32, #tpu.memory_space<vmem>>, vector<32x128xf32>
    %cst = arith.constant dense<0.000000e+00> : vector<16x128xf32>
    %2 = tpu.matmul %0, %1, %cst {dimension_numbers = #tpu.dot_dimension_numbers<[1], [0], [0], [1], [0, 0, 1, 1], [], []>} : vector<16x32xf32>, vector<32x128xf32>, vector<16x128xf32> -> vector<16x128xf32>
    %c0_3 = arith.constant 0 : index
    %c0_4 = arith.constant 0 : index
    %3 = vector.load %arg3[%c0_3, %c0_4] : memref<1x128xf32, #tpu.memory_space<vmem>>, vector<1x128xf32>
    %4 = vector.broadcast %3 : vector<1x128xf32> to vector<16x128xf32>
    %5 = arith.addf %2, %4 : vector<16x128xf32>
    %cst_5 = arith.constant 0.000000e+00 : f32
    %6 = vector.broadcast %cst_5 : f32 to vector<16x128xf32>
    %7 = arith.maximumf %5, %6 : vector<16x128xf32>
    %c0_6 = arith.constant 0 : index
    %c0_7 = arith.constant 0 : index
    %8 = vector.load %arg4[%c0_6, %c0_7] : memref<128x16xf32, #tpu.memory_space<vmem>>, vector<128x16xf32>
    %cst_8 = arith.constant dense<0.000000e+00> : vector<16x16xf32>
    %9 = tpu.matmul %7, %8, %cst_8 {dimension_numbers = #tpu.dot_dimension_numbers<[1], [0], [0], [1], [0, 0, 1, 1], [], []>} : vector<16x128xf32>, vector<128x16xf32>, vector<16x16xf32> -> vector<16x16xf32>
    %c0_9 = arith.constant 0 : index
    %c0_10 = arith.constant 0 : index
    %10 = vector.load %arg5[%c0_9, %c0_10] : memref<1x16xf32, #tpu.memory_space<vmem>>, vector<1x16xf32>
    %11 = vector.broadcast %10 : vector<1x16xf32> to vector<16x16xf32>
    %12 = arith.addf %9, %11 : vector<16x16xf32>
    %c0_11 = arith.constant 0 : index
    %c0_12 = arith.constant 0 : index
    %13 = vector.load %arg6[%c0_11, %c0_12] : memref<16x16xf32, #tpu.memory_space<vmem>>, vector<16x16xf32>
    tpu.vector_store %arg6[%c0_11, %c0_12], %12 {strides = array<i32>} : memref<16x16xf32, #tpu.memory_space<vmem>>, vector<16x16xf32>,
    return
  }
  func.func @transform_0(%arg0: i32) -> (i32, i32) {
    %c0_i32 = arith.constant 0 : i32
    %c0_i32_0 = arith.constant 0 : i32
    return %arg0, %c0_i32 : i32, i32
  }
  func.func @transform_1(%arg0: i32) -> (i32, i32) {
    %c0_i32 = arith.constant 0 : i32
    %c0_i32_0 = arith.constant 0 : i32
    %c0_i32_1 = arith.constant 0 : i32
    return %c0_i32, %c0_i32_0 : i32, i32
  }
  func.func @transform_2(%arg0: i32) -> (i32, i32) {
    %c0_i32 = arith.constant 0 : i32
    %c0_i32_0 = arith.constant 0 : i32
    %c0_i32_1 = arith.constant 0 : i32
    return %c0_i32, %c0_i32_0 : i32, i32
  }
  func.func @transform_3(%arg0: i32) -> (i32, i32) {
    %c0_i32 = arith.constant 0 : i32
    %c0_i32_0 = arith.constant 0 : i32
    %c0_i32_1 = arith.constant 0 : i32
    return %c0_i32, %c0_i32_0 : i32, i32
  }
  func.func @transform_4(%arg0: i32) -> (i32, i32) {
    %c0_i32 = arith.constant 0 : i32
    %c0_i32_0 = arith.constant 0 : i32
    %c0_i32_1 = arith.constant 0 : i32
    return %c0_i32, %c0_i32_0 : i32, i32
  }
  func.func @transform_5(%arg0: i32) -> (i32, i32) {
    %c0_i32 = arith.constant 0 : i32
    %c0_i32_0 = arith.constant 0 : i32
    return %arg0, %c0_i32 : i32, i32
  }
}

</mosaic_0001>

<llo_original>
// kernel: tpu_custom_call.1
$region0: #{tpu_custom_call.1}
  #allocation0 [shape = 'u32[]', space=smem, size = 0x4, offset = 0x4, fixed_abs, tag = 'smem constant byte address 0x4 - core index']
  #allocation1 [shape = 'u32[72,128]{1,0:T(1,128)}', space=vmem, size = 0x9000, scoped, tag = 'internal scratch']
  %s0 = inlined_call_operand.vmem [shape: f32[16,32], index: 0, kind: input, shape index: {}]
  %s1 = inlined_call_operand.vmem [shape: f32[32,128], index: 1, kind: input, shape index: {}]
  %s2 = inlined_call_operand.vmem [shape: f32[1,128], index: 2, kind: input, shape index: {}]
  %s3 = inlined_call_operand.vmem [shape: f32[128,16], index: 3, kind: input, shape index: {}]
  %s4 = inlined_call_operand.vmem [shape: f32[1,16], index: 4, kind: input, shape index: {}]
  %s5 = inlined_call_operand.hbm [shape: f32[16,16], index: 5, kind: output, shape index: {}]
  %s6 = sld [smem:[#allocation0]]
  $region30: #{tpu_custom_call.1} parent=0
    _
  %s8 = ssub.s32 1, %s6
  %s9 = scalar_select 0, %s8, %s6
  $region1: #{tpu_custom_call.1} parent=0
    #allocation2 [shape = 'u8[8192]{0}', space=vmem, size = 0x2000, scoped, tag = 'output window, operand 0, single buffered']
    #allocation3 [shape = 's32[1]{0}', space=sflag, size = 0x4, scoped, tag = 'scoped memory for tpu_custom_call.1']
    %10 = vsyncpa [#allocation3], 0
    // Predicated region
    $region2: #{tpu_custom_call.1} parent=1 // pred_check
      _
    $region3: #{tpu_custom_call.1} parent=1 // pred_check_branch
      %12 = sbr.rel (0) target = $region5
    $region4: #{tpu_custom_call.1} parent=1 // pred_region
      _
    $region5: #{tpu_custom_call.1} parent=1 // pred_fallthru
      _
    // Predicated region
    $region6: #{tpu_custom_call.1} parent=1 // pred_check
      _
    $region7: #{tpu_custom_call.1} parent=1 // pred_check_branch
      %14 = sbr.rel (0) target = $region9
    $region8: #{tpu_custom_call.1} parent=1 // pred_region
      _
    $region9: #{tpu_custom_call.1} parent=1 // pred_fallthru
      _
    // Predicated region
    $region10: #{tpu_custom_call.1} parent=1 // pred_check
      _
    $region11: #{tpu_custom_call.1} parent=1 // pred_check_branch
      %16 = sbr.rel (0) target = $region13
    $region12: #{tpu_custom_call.1} parent=1 // pred_region
      _
    $region13: #{tpu_custom_call.1} parent=1 // pred_fallthru
      _
    // Predicated region
    $region14: #{tpu_custom_call.1} parent=1 // pred_check
      _
    $region15: #{tpu_custom_call.1} parent=1 // pred_check_branch
      %18 = sbr.rel (0) target = $region17
    $region16: #{tpu_custom_call.1} parent=1 // pred_region
      _
    $region17: #{tpu_custom_call.1} parent=1 // pred_fallthru
      _
    // Predicated region
    $region18: #{tpu_custom_call.1} parent=1 // pred_check
      _
    $region19: #{tpu_custom_call.1} parent=1 // pred_check_branch
      %20 = sbr.rel (0) target = $region21
    $region20: #{tpu_custom_call.1} parent=1 // pred_region
      _
    $region21: #{tpu_custom_call.1} parent=1 // pred_fallthru
      _
    %v21 = vld [vmem:[%s0] sm:$0xff]
    %v22 = vld [vmem:[%s0 + $0x8] sm:$0xff]
    %v23 = vld [vmem:[%s1] sm:$0xff]
    %v24 = vld [vmem:[%s1 + $0x8] sm:$0xff]
    %v25 = vld [vmem:[%s1 + $0x10] sm:$0xff]
    %v26 = vld [vmem:[%s1 + $0x18] sm:$0xff]
    %v27 = vld [vmem:[%s2] sm:$0x1]
    %v29 = vperm.slane %v27, 0
    %vm31 = vcmask 261120
    %v33 = vsel %vm31, %v21, 0
    %v36 = vsel %vm31, %v22, 0
    %38 = vmatpush.msra.mxu0 0.0
    %39 = vmatpush.msra.mxu0 0.0
    %40 = vmatpush.msra.mxu0 0.0
    %41 = vmatpush.msra.mxu0 0.0
    %42 = vmatpush.msra.mxu0 0.0
    %43 = vmatpush.msra.mxu0 0.0
    %44 = vmatpush.msra.mxu0 0.0
    %45 = vmatpush.msra.mxu0 0.0
    %46 = vmatpush.msra.mxu0 0.0
    %47 = vmatpush.msra.mxu0 0.0
    %48 = vmatpush.msra.mxu0 0.0
    %49 = vmatpush.msra.mxu0 0.0
    %50 = vmatpush.msra.mxu0 %v26
    %51 = vmatpush.msra.mxu0 %v25
    %52 = vmatpush.msra.mxu0 %v24
    %53 = vmatpush.msra.mxu0 %v23
    %54 = vmatmul.f32.gmra.mxu0 %v33
    %v55 = vpop.f32.mrf.mxu0
    %v56 = vadd.f32 %v29, %v55
    %57 = vmatmul.f32.gmra.mxu0 %v36
    %v58 = vpop.f32.mrf.mxu0
    %v59 = vadd.f32 %v29, %v58
    %60 = vdwg.mxu0
    %v61 = vmax.f32 %v56, 0.0
    %v62 = vmax.f32 %v59, 0.0
    %v63 = vld [vmem:[%s3] sm:$0xff]
    %v64 = vld [vmem:[%s3 + $0x8] sm:$0xff]
    %v65 = vld [vmem:[%s3 + $0x10] sm:$0xff]
    %v66 = vld [vmem:[%s3 + $0x18] sm:$0xff]
    %v67 = vld [vmem:[%s3 + $0x20] sm:$0xff]
    %v68 = vld [vmem:[%s3 + $0x28] sm:$0xff]
    %v69 = vld [vmem:[%s3 + $0x30] sm:$0xff]
    %v70 = vld [vmem:[%s3 + $0x38] sm:$0xff]
    %v71 = vld [vmem:[%s3 + $0x40] sm:$0xff]
    %v72 = vld [vmem:[%s3 + $0x48] sm:$0xff]
    %v73 = vld [vmem:[%s3 + $0x50] sm:$0xff]
    %v74 = vld [vmem:[%s3 + $0x58] sm:$0xff]
    %v75 = vld [vmem:[%s3 + $0x60] sm:$0xff]
    %v76 = vld [vmem:[%s3 + $0x68] sm:$0xff]
    %v77 = vld [vmem:[%s3 + $0x70] sm:$0xff]
    %v78 = vld [vmem:[%s3 + $0x78] sm:$0xff]
    %v79 = vld [vmem:[%s4] sm:$0x1]
    %v81 = vperm.slane %v79, 0
    %83 = vmatpush.msra.mxu0 %v78
    %84 = vmatpush.msra.mxu0 %v77
    %85 = vmatpush.msra.mxu0 %v76
    %86 = vmatpush.msra.mxu0 %v75
    %87 = vmatpush.msra.mxu0 %v74
    %88 = vmatpush.msra.mxu0 %v73
    %89 = vmatpush.msra.mxu0 %v72
    %90 = vmatpush.msra.mxu0 %v71
    %91 = vmatpush.msra.mxu0 %v70
    %92 = vmatpush.msra.mxu0 %v69
    %93 = vmatpush.msra.mxu0 %v68
    %94 = vmatpush.msra.mxu0 %v67
    %95 = vmatpush.msra.mxu0 %v66
    %96 = vmatpush.msra.mxu0 %v65
    %97 = vmatpush.msra.mxu0 %v64
    %98 = vmatpush.msra.mxu0 %v63
    %99 = vmatmul.f32.gmra.mxu0 %v61
    %v100 = vpop.f32.mrf.mxu0
    %v101 = vadd.f32 %v81, %v100
    %102 = vmatmul.f32.gmra.mxu0 %v62
    %v103 = vpop.f32.mrf.mxu0
    %v104 = vadd.f32 %v81, %v103
    %105 = vdwg.mxu0
    %vm106 = vcmask 130048
    %107 = vst.msk [vmem:[#allocation2] sm:$0xff] %vm106, %v101
    %108 = vst.msk [vmem:[#allocation2 + $0x8] sm:$0xff] %vm106, %v104
    // Predicated region
    $region22: #{tpu_custom_call.1} parent=1 // pred_check
      _
    $region23: #{tpu_custom_call.1} parent=1 // pred_check_branch
      %110 = sbr.rel (0) target = $region25
    $region24: #{tpu_custom_call.1} parent=1 // pred_region
      %112 = vsyncadd [#allocation3], 0
      %s113 = sshll.u32 [#allocation2], 4
      %s114 = int_to_ptr.vmem [resolvable:$true] %s113
      %s115 = sshll.u32 %s5, 4
      %s116 = int_to_ptr.hbm [resolvable:$true] %s115
      %121 = dma.vmem_to_hbm [thread:$0]  %s114, 256, %s116, [#allocation3], 128, 128, 8
    $region25: #{tpu_custom_call.1} parent=1 // pred_fallthru
      _
    // Predicated region
    $region26: #{tpu_custom_call.1} parent=1 // pred_check
      _
    $region27: #{tpu_custom_call.1} parent=1 // pred_check_branch
      %123 = sbr.rel (0) target = $region29
    $region28: #{tpu_custom_call.1} parent=1 // pred_region
      %125 = dma.done [#allocation3], 256
    $region29: #{tpu_custom_call.1} parent=1 // pred_fallthru
      _
    %126 = vsyncpa [#allocation3], 1

</llo_original>
